<compile_context>
chip_gen: v6e
topology: v6e:2x2x1
jax: 0.10.0
libtpu: 0.0.40
codegen_flags: <defaults>
</compile_context>

<pallas_src>
import jax
import jax.numpy as jnp
import numpy as np
from jax.experimental import pallas as pl
from jax.experimental.pallas import tpu as pltpu

# Set to jnp.bfloat16 on v6e/v7x once the conv matmuls become compute-bound (full-rate MXU,
# halves operand vreg/VMEM traffic); accumulation stays f32 via preferred_element_type.
MATMUL_DTYPE = jnp.float32


# ----------------------------------------------------------------------------
# Fused kernel: conv1 -> relu -> conv2 -> relu -> maxpool(2) -> mean -> linear
# ----------------------------------------------------------------------------
def _har_kernel(x_ref, w1s_ref, b1_ref, w2t_ref, b2_ref, wg_ref, bg_ref, pool_ref,
                out_ref):
    C_in, BL = x_ref.shape            # lane-dense slab (C_in, B*L)
    NF = w2t_ref.shape[1]             # n_filter = 64
    B = out_ref.shape[1]
    L = BL // B
    f32 = jnp.float32

    # Batch-boundary masks: position of each lane within its own length-L sample.
    pos_c = jax.lax.broadcasted_iota(jnp.int32, (C_in, BL), 1) % L
    pos_f = jax.lax.broadcasted_iota(jnp.int32, (NF, BL), 1) % L

    # ---- Conv1d #1 (k=3, pad=1): stacked taps -> ONE matmul --------------------
    # roll(+1) gives x[:, l-1]; roll(BL-1) == roll(-1) gives x[:, l+1]; the masks zero
    # the taps that would otherwise leak across sample boundaries / wrap around.
    x = x_ref[...].astype(MATMUL_DTYPE)                                     # (C_in, BL)
    x_prev = jnp.where(pos_c != 0, pltpu.roll(x, 1, axis=1), 0.0)
    x_next = jnp.where(pos_c != L - 1, pltpu.roll(x, BL - 1, axis=1), 0.0)
    xs = jnp.concatenate([x_prev, x, x_next], axis=0)                       # (3*C_in, BL)
    h1 = jnp.dot(w1s_ref[...].astype(MATMUL_DTYPE), xs, preferred_element_type=f32)
    h1 = jnp.maximum(h1 + b1_ref[...], 0.0)                                 # ReLU, (NF, BL)
    # Dropout(0.5): identity at inference.

    # ---- Conv1d #2 (k=3, pad=1): tap-split matmuls, shift the OUTPUTS ----------
    h1m = h1.astype(MATMUL_DTYPE)
    z0 = jnp.dot(w2t_ref[0].astype(MATMUL_DTYPE), h1m, preferred_element_type=f32)
    z1 = jnp.dot(w2t_ref[1].astype(MATMUL_DTYPE), h1m, preferred_element_type=f32)
    z2 = jnp.dot(w2t_ref[2].astype(MATMUL_DTYPE), h1m, preferred_element_type=f32)
    h2 = z1 + b2_ref[...]
    h2 = h2 + jnp.where(pos_f != 0, pltpu.roll(z0, 1, axis=1), 0.0)         # tap k=0 @ l-1
    h2 = h2 + jnp.where(pos_f != L - 1, pltpu.roll(z2, BL - 1, axis=1), 0.0)  # tap k=2 @ l+1
    h2 = jnp.maximum(h2, 0.0)                                               # ReLU, (NF, BL)

    # ---- MaxPool1d(2) + AdaptiveAvgPool1d(1) + per-sample segment-sum ----------
    # pair_max[:, l] = max(h2[:, l], h2[:, l+1]); odd / cross-sample lanes are zeroed by
    # the pooling matrix, which also carries the 2/L mean scaling and the sample split.
    pair_max = jnp.maximum(h2, pltpu.roll(h2, BL - 1, axis=1))
    pooled = jnp.dot(pair_max, pool_ref[...], preferred_element_type=f32)   # (NF, B)

    # ---- gap Linear(NF, num_classes): one tiny matmul + ONE store --------------
    out_ref[...] = jnp.dot(wg_ref[...], pooled, preferred_element_type=f32) + bg_ref[...]


# ----------------------------------------------------------------------------
# Wrapper: single pallas_call, whole arrays resident in VMEM, no grid.
# ----------------------------------------------------------------------------
@jax.jit
def har_forward(x, params):
    """x: (B, C_in, L).  Returns logits (B, num_classes)."""
    x = x.astype(jnp.float32)
    B, C_in, L = x.shape
    assert L % 2 == 0, "MaxPool1d(2) path assumes even length"
    NC = params["wg"].shape[0]
    BL = B * L

    # Lane-dense slab: samples concatenated along the 128-wide lane axis (layout plumbing).
    x_slab = jnp.transpose(x, (1, 0, 2)).reshape(C_in, BL)

    # Constant pooling matrix: pool[l, b] = 2/L on even lanes of sample b, else 0.
    # One matmul with it == select even-lane pair-maxes + mean + per-sample segmentation.
    lane = jnp.arange(BL)
    pool = jnp.where(
        (lane[:, None] // L == jnp.arange(B)[None, :]) & (lane[:, None] % 2 == 0),
        2.0 / L, 0.0).astype(jnp.float32)                                    # (BL, B)

    vmem = pl.BlockSpec(memory_space=pltpu.MemorySpace.VMEM)
    out_t = pl.pallas_call(
        _har_kernel,
        out_shape=jax.ShapeDtypeStruct((NC, B), jnp.float32),
        in_specs=[vmem] * 8,
        out_specs=vmem,
    )(x_slab, params["w1s"], params["b1"], params["w2t"], params["b2"],
      params["wg"], params["bg"], pool)
    return out_t.T                                                           # (B, NC)


# ----------------------------------------------------------------------------
# Deterministic parameter init (PyTorch-like uniform bounds) + packing.
# ----------------------------------------------------------------------------
def init_params(key, input_size, num_classes, n_filter=64):
    ks = jax.random.split(key, 6)
    k1 = 1.0 / float(np.sqrt(input_size * 3.0))
    W1 = jax.random.uniform(ks[0], (n_filter, input_size, 3), jnp.float32, -k1, k1)
    b1 = jax.random.uniform(ks[1], (n_filter,), jnp.float32, -k1, k1)
    k2 = 1.0 / float(np.sqrt(n_filter * 3.0))
    W2 = jax.random.uniform(ks[2], (n_filter, n_filter, 3), jnp.float32, -k2, k2)
    b2 = jax.random.uniform(ks[3], (n_filter,), jnp.float32, -k2, k2)
    kg = 1.0 / float(np.sqrt(n_filter))
    Wg = jax.random.uniform(ks[4], (num_classes, n_filter), jnp.float32, -kg, kg)
    bg = jax.random.uniform(ks[5], (num_classes,), jnp.float32, -kg, kg)

    params = {
        # Conv1 packed as (NF, 3*C_in): column blocks [tap k=0 | k=1 | k=2], matching the
        # in-kernel sublane stacking [x[l-1]; x[l]; x[l+1]].
        "w1s": jnp.concatenate([W1[:, :, 0], W1[:, :, 1], W1[:, :, 2]], axis=1),
        "b1": b1.reshape(n_filter, 1),
        # Conv2 kept per-tap: (3, NF, NF); tap k multiplies x[l + k - 1].
        "w2t": jnp.transpose(W2, (2, 0, 1)),
        "b2": b2.reshape(n_filter, 1),
        "wg": Wg,                              # (NC, NF)
        "bg": bg.reshape(num_classes, 1),      # (NC, 1)
    }
    raw = (W1, b1, W2, b2, Wg, bg)
    return params, raw


# ----------------------------------------------------------------------------
# Pure-JAX reference of HAR_model.forward (for correctness check).
# ----------------------------------------------------------------------------
def reference_forward(x, raw):
    W1, b1, W2, b2, Wg, bg = raw
    x = x.astype(jnp.float32)

    def conv1d_k3_p1(inp, W, b):
        Bn, Cn, Ln = inp.shape
        xp = jnp.pad(inp, ((0, 0), (0, 0), (1, 1)))
        out = jnp.broadcast_to(b[None, :, None], (Bn, W.shape[0], Ln))
        for k in range(3):
            out = out + jnp.einsum("oc,bcl->bol", W[:, :, k], xp[:, :, k:k + Ln])
        return out

    h1 = jax.nn.relu(conv1d_k3_p1(x, W1, b1))
    h2 = jax.nn.relu(conv1d_k3_p1(h1, W2, b2))
    Bn, NF, Ln = h2.shape
    pooled = jnp.max(h2.reshape(Bn, NF, Ln // 2, 2), axis=-1).mean(axis=-1)  # (B, NF)
    return pooled @ Wg.T + bg[None, :]


if __name__ == "__main__":
    # Small shapes consistent with the module: batch=4, input_size(channels)=8,
    # seq length=64, n_filter=64 (fixed by the model), num_classes=6.
    B, C_IN, L, NUM_CLASSES = 4, 8, 64, 6

    root = jax.random.PRNGKey(0)
    k_x, k_p = jax.random.split(root)

    x = jax.random.normal(k_x, (B, C_IN, L), dtype=jnp.float32)
    params, raw = init_params(k_p, C_IN, NUM_CLASSES)

    out = har_forward(x, params)
    jax.block_until_ready(out)
    assert out.shape == (B, NUM_CLASSES), out.shape

    ref = reference_forward(x, raw)
    np.testing.assert_allclose(np.asarray(out), np.asarray(ref), rtol=2e-2, atol=2e-2)

    print("KERNEL_OK")
</pallas_src>

<mosaic_0001>
module attributes {stable_mosaic.version = 11 : i64} {
  func.func @_har_kernel(%arg0: memref<8x256xf32, #tpu.memory_space<vmem>>, %arg1: memref<64x24xf32, #tpu.memory_space<vmem>>, %arg2: memref<64x1xf32, #tpu.memory_space<vmem>>, %arg3: memref<3x64x64xf32, #tpu.memory_space<vmem>>, %arg4: memref<64x1xf32, #tpu.memory_space<vmem>>, %arg5: memref<6x64xf32, #tpu.memory_space<vmem>>, %arg6: memref<6x1xf32, #tpu.memory_space<vmem>>, %arg7: memref<256x4xf32, #tpu.memory_space<vmem>>, %arg8: memref<6x4xf32, #tpu.memory_space<vmem>>) attributes {dimension_semantics = [], scalar_prefetch = 0 : i64, scratch_operands = 0 : i64, tpu.core_type = #tpu.core_type<tc>} {
    %0 = tpu.iota {dimensions = array<i32: 1>} : vector<8x256xi32>
    %c64_i32 = arith.constant 64 : i32
    %c0_i32 = arith.constant 0 : i32
    %1 = arith.cmpi eq, %c64_i32, %c0_i32 : i32
    %c1_i32 = arith.constant 1 : i32
    %2 = arith.select %1, %c1_i32, %c64_i32 : i32
    %3 = vector.broadcast %2 : i32 to vector<8x256xi32>
    %4 = arith.remsi %0, %3 : vector<8x256xi32>
    %c0_i32_0 = arith.constant 0 : i32
    %5 = vector.broadcast %c0_i32_0 : i32 to vector<8x256xi32>
    %6 = arith.cmpi ne, %4, %5 : vector<8x256xi32>
    %c0_i32_1 = arith.constant 0 : i32
    %7 = vector.broadcast %c0_i32_1 : i32 to vector<8x256xi32>
    %8 = arith.cmpi slt, %4, %7 : vector<8x256xi32>
    %c0_i32_2 = arith.constant 0 : i32
    %9 = arith.cmpi slt, %2, %c0_i32_2 : i32
    %10 = vector.broadcast %9 : i1 to vector<8x256xi1>
    %11 = vector.broadcast %10 : vector<8x256xi1> to vector<8x256xi1>
    %12 = arith.xori %8, %11 : vector<8x256xi1>
    %13 = arith.andi %12, %6 : vector<8x256xi1>
    %14 = vector.broadcast %2 : i32 to vector<8x256xi32>
    %15 = arith.addi %4, %14 : vector<8x256xi32>
    %16 = arith.select %13, %15, %4 : vector<8x256xi1>, vector<8x256xi32>
    %17 = tpu.iota {dimensions = array<i32: 1>} : vector<64x256xi32>
    %c64_i32_3 = arith.constant 64 : i32
    %c0_i32_4 = arith.constant 0 : i32
    %18 = arith.cmpi eq, %c64_i32_3, %c0_i32_4 : i32
    %c1_i32_5 = arith.constant 1 : i32
    %19 = arith.select %18, %c1_i32_5, %c64_i32_3 : i32
    %20 = vector.broadcast %19 : i32 to vector<64x256xi32>
    %21 = arith.remsi %17, %20 : vector<64x256xi32>
    %c0_i32_6 = arith.constant 0 : i32
    %22 = vector.broadcast %c0_i32_6 : i32 to vector<64x256xi32>
    %23 = arith.cmpi ne, %21, %22 : vector<64x256xi32>
    %c0_i32_7 = arith.constant 0 : i32
    %24 = vector.broadcast %c0_i32_7 : i32 to vector<64x256xi32>
    %25 = arith.cmpi slt, %21, %24 : vector<64x256xi32>
    %c0_i32_8 = arith.constant 0 : i32
    %26 = arith.cmpi slt, %19, %c0_i32_8 : i32
    %27 = vector.broadcast %26 : i1 to vector<64x256xi1>
    %28 = vector.broadcast %27 : vector<64x256xi1> to vector<64x256xi1>
    %29 = arith.xori %25, %28 : vector<64x256xi1>
    %30 = arith.andi %29, %23 : vector<64x256xi1>
    %31 = vector.broadcast %19 : i32 to vector<64x256xi32>
    %32 = arith.addi %21, %31 : vector<64x256xi32>
    %33 = arith.select %30, %32, %21 : vector<64x256xi1>, vector<64x256xi32>
    %c0 = arith.constant 0 : index
    %c0_9 = arith.constant 0 : index
    %34 = vector.load %arg0[%c0, %c0_9] : memref<8x256xf32, #tpu.memory_space<vmem>>, vector<8x256xf32>
    %c0_i32_10 = arith.constant 0 : i32
    %35 = vector.broadcast %c0_i32_10 : i32 to vector<8x256xi32>
    %36 = arith.cmpi ne, %16, %35 : vector<8x256xi32>
    %c1_i32_11 = arith.constant 1 : i32
    %37 = tpu.dynamic_rotate %34 by %c1_i32_11 dim 1 : vector<8x256xf32>, i32 -> vector<8x256xf32>
    %cst = arith.constant 0.000000e+00 : f32
    %38 = vector.broadcast %cst : f32 to vector<8x256xf32>
    %39 = arith.select %36, %37, %38 : vector<8x256xi1>, vector<8x256xf32>
    %c63_i32 = arith.constant 63 : i32
    %40 = vector.broadcast %c63_i32 : i32 to vector<8x256xi32>
    %41 = arith.cmpi ne, %16, %40 : vector<8x256xi32>
    %c255_i32 = arith.constant 255 : i32
    %42 = tpu.dynamic_rotate %34 by %c255_i32 dim 1 : vector<8x256xf32>, i32 -> vector<8x256xf32>
    %cst_12 = arith.constant 0.000000e+00 : f32
    %43 = vector.broadcast %cst_12 : f32 to vector<8x256xf32>
    %44 = arith.select %41, %42, %43 : vector<8x256xi1>, vector<8x256xf32>
    %45 = tpu.concatenate %39, %34, %44 in 0 : vector<8x256xf32>, vector<8x256xf32>, vector<8x256xf32> -> vector<24x256xf32>
    %c0_13 = arith.constant 0 : index
    %c0_14 = arith.constant 0 : index
    %46 = vector.load %arg1[%c0_13, %c0_14] : memref<64x24xf32, #tpu.memory_space<vmem>>, vector<64x24xf32>
    %cst_15 = arith.constant dense<0.000000e+00> : vector<64x256xf32>
    %47 = tpu.matmul %46, %45, %cst_15 {dimension_numbers = #tpu.dot_dimension_numbers<[1], [0], [0], [1], [0, 0, 1, 1], [], []>} : vector<64x24xf32>, vector<24x256xf32>, vector<64x256xf32> -> vector<64x256xf32>
    %c0_16 = arith.constant 0 : index
    %c0_17 = arith.constant 0 : index
    %48 = vector.load %arg2[%c0_16, %c0_17] : memref<64x1xf32, #tpu.memory_space<vmem>>, vector<64x1xf32>
    %49 = vector.broadcast %48 : vector<64x1xf32> to vector<64x256xf32>
    %50 = arith.addf %47, %49 : vector<64x256xf32>
    %cst_18 = arith.constant 0.000000e+00 : f32
    %51 = vector.broadcast %cst_18 : f32 to vector<64x256xf32>
    %52 = arith.maximumf %50, %51 : vector<64x256xf32>
    %c0_19 = arith.constant 0 : index
    %c0_20 = arith.constant 0 : index
    %c0_21 = arith.constant 0 : index
    %53 = vector.load %arg3[%c0_19, %c0_20, %c0_21] : memref<3x64x64xf32, #tpu.memory_space<vmem>>, vector<1x64x64xf32>
    %54 = vector.shape_cast %53 : vector<1x64x64xf32> to vector<64x64xf32>
    %cst_22 = arith.constant dense<0.000000e+00> : vector<64x256xf32>
    %55 = tpu.matmul %54, %52, %cst_22 {dimension_numbers = #tpu.dot_dimension_numbers<[1], [0], [0], [1], [0, 0, 1, 1], [], []>} : vector<64x64xf32>, vector<64x256xf32>, vector<64x256xf32> -> vector<64x256xf32>
    %c1 = arith.constant 1 : index
    %c0_23 = arith.constant 0 : index
    %c0_24 = arith.constant 0 : index
    %56 = vector.load %arg3[%c1, %c0_23, %c0_24] : memref<3x64x64xf32, #tpu.memory_space<vmem>>, vector<1x64x64xf32>
    %57 = vector.shape_cast %56 : vector<1x64x64xf32> to vector<64x64xf32>
    %cst_25 = arith.constant dense<0.000000e+00> : vector<64x256xf32>
    %58 = tpu.matmul %57, %52, %cst_25 {dimension_numbers = #tpu.dot_dimension_numbers<[1], [0], [0], [1], [0, 0, 1, 1], [], []>} : vector<64x64xf32>, vector<64x256xf32>, vector<64x256xf32> -> vector<64x256xf32>
    %c2 = arith.constant 2 : index
    %c0_26 = arith.constant 0 : index
    %c0_27 = arith.constant 0 : index
    %59 = vector.load %arg3[%c2, %c0_26, %c0_27] : memref<3x64x64xf32, #tpu.memory_space<vmem>>, vector<1x64x64xf32>
    %60 = vector.shape_cast %59 : vector<1x64x64xf32> to vector<64x64xf32>
    %cst_28 = arith.constant dense<0.000000e+00> : vector<64x256xf32>
    %61 = tpu.matmul %60, %52, %cst_28 {dimension_numbers = #tpu.dot_dimension_numbers<[1], [0], [0], [1], [0, 0, 1, 1], [], []>} : vector<64x64xf32>, vector<64x256xf32>, vector<64x256xf32> -> vector<64x256xf32>
    %c0_29 = arith.constant 0 : index
    %c0_30 = arith.constant 0 : index
    %62 = vector.load %arg4[%c0_29, %c0_30] : memref<64x1xf32, #tpu.memory_space<vmem>>, vector<64x1xf32>
    %63 = vector.broadcast %62 : vector<64x1xf32> to vector<64x256xf32>
    %64 = arith.addf %58, %63 : vector<64x256xf32>
    %c0_i32_31 = arith.constant 0 : i32
    %65 = vector.broadcast %c0_i32_31 : i32 to vector<64x256xi32>
    %66 = arith.cmpi ne, %33, %65 : vector<64x256xi32>
    %c1_i32_32 = arith.constant 1 : i32
    %67 = tpu.dynamic_rotate %55 by %c1_i32_32 dim 1 : vector<64x256xf32>, i32 -> vector<64x256xf32>
    %cst_33 = arith.constant 0.000000e+00 : f32
    %68 = vector.broadcast %cst_33 : f32 to vector<64x256xf32>
    %69 = arith.select %66, %67, %68 : vector<64x256xi1>, vector<64x256xf32>
    %70 = arith.addf %64, %69 : vector<64x256xf32>
    %c63_i32_34 = arith.constant 63 : i32
    %71 = vector.broadcast %c63_i32_34 : i32 to vector<64x256xi32>
    %72 = arith.cmpi ne, %33, %71 : vector<64x256xi32>
    %c255_i32_35 = arith.constant 255 : i32
    %73 = tpu.dynamic_rotate %61 by %c255_i32_35 dim 1 : vector<64x256xf32>, i32 -> vector<64x256xf32>
    %cst_36 = arith.constant 0.000000e+00 : f32
    %74 = vector.broadcast %cst_36 : f32 to vector<64x256xf32>
    %75 = arith.select %72, %73, %74 : vector<64x256xi1>, vector<64x256xf32>
    %76 = arith.addf %70, %75 : vector<64x256xf32>
    %cst_37 = arith.constant 0.000000e+00 : f32
    %77 = vector.broadcast %cst_37 : f32 to vector<64x256xf32>
    %78 = arith.maximumf %76, %77 : vector<64x256xf32>
    %c255_i32_38 = arith.constant 255 : i32
    %79 = tpu.dynamic_rotate %78 by %c255_i32_38 dim 1 : vector<64x256xf32>, i32 -> vector<64x256xf32>
    %80 = arith.maximumf %78, %79 : vector<64x256xf32>
    %c0_39 = arith.constant 0 : index
    %c0_40 = arith.constant 0 : index
    %81 = vector.load %arg7[%c0_39, %c0_40] : memref<256x4xf32, #tpu.memory_space<vmem>>, vector<256x4xf32>
    %cst_41 = arith.constant dense<0.000000e+00> : vector<64x4xf32>
    %82 = tpu.matmul %80, %81, %cst_41 {dimension_numbers = #tpu.dot_dimension_numbers<[1], [0], [0], [1], [0, 0, 1, 1], [], []>} : vector<64x256xf32>, vector<256x4xf32>, vector<64x4xf32> -> vector<64x4xf32>
    %c0_42 = arith.constant 0 : index
    %c0_43 = arith.constant 0 : index
    %83 = vector.load %arg5[%c0_42, %c0_43] : memref<6x64xf32, #tpu.memory_space<vmem>>, vector<6x64xf32>
    %cst_44 = arith.constant dense<0.000000e+00> : vector<6x4xf32>
    %84 = tpu.matmul %83, %82, %cst_44 {dimension_numbers = #tpu.dot_dimension_numbers<[1], [0], [0], [1], [0, 0, 1, 1], [], []>} : vector<6x64xf32>, vector<64x4xf32>, vector<6x4xf32> -> vector<6x4xf32>
    %c0_45 = arith.constant 0 : index
    %c0_46 = arith.constant 0 : index
    %85 = vector.load %arg6[%c0_45, %c0_46] : memref<6x1xf32, #tpu.memory_space<vmem>>, vector<6x1xf32>
    %86 = vector.broadcast %85 : vector<6x1xf32> to vector<6x4xf32>
    %87 = arith.addf %84, %86 : vector<6x4xf32>
    %c0_47 = arith.constant 0 : index
    %c0_48 = arith.constant 0 : index
    %88 = vector.load %arg8[%c0_47, %c0_48] : memref<6x4xf32, #tpu.memory_space<vmem>>, vector<6x4xf32>
    tpu.vector_store %arg8[%c0_47, %c0_48], %87 {strides = array<i32>} : memref<6x4xf32, #tpu.memory_space<vmem>>, vector<6x4xf32>,
    return
  }
}

</mosaic_0001>

<llo_original>
// kernel: har_forward.1
$region0: #{har_forward.1}
  #allocation0 [shape = 'u32[]', space=smem, size = 0x4, offset = 0x4, fixed_abs, tag = 'smem constant byte address 0x4 - core index']
  #allocation1 [shape = 'u32[144,128]{1,0:T(1,128)}', space=vmem, size = 0x12000, scoped, tag = 'internal scratch']
  %s0 = inlined_call_operand.vmem [shape: f32[8,256], index: 0, kind: input, shape index: {}]
  %s1 = inlined_call_operand.vmem [shape: f32[64,24], index: 1, kind: input, shape index: {}]
  %s2 = inlined_call_operand.vmem [shape: f32[64,1], index: 2, kind: input, shape index: {}]
  %s3 = inlined_call_operand.vmem [shape: f32[3,64,64], index: 3, kind: input, shape index: {}]
  %s4 = inlined_call_operand.vmem [shape: f32[64,1], index: 4, kind: input, shape index: {}]
  %s5 = inlined_call_operand.vmem [shape: f32[6,64], index: 5, kind: input, shape index: {}]
  %s6 = inlined_call_operand.vmem [shape: f32[6,1], index: 6, kind: input, shape index: {}]
  %s7 = inlined_call_operand.vmem [shape: f32[256,4], index: 7, kind: input, shape index: {}]
  %s8 = inlined_call_operand.vmem [shape: f32[6,4], index: 8, kind: output, shape index: {}]
  %s9 = sld [smem:[#allocation0]]
  $region42: #{har_forward.1} parent=0
    _
  %s11 = ssub.s32 1, %s9
  %s12 = scalar_select 0, %s11, %s9
  // Predicated region
  $region2: #{har_forward.1} parent=0 // pred_check
    _
  $region3: #{har_forward.1} parent=0 // pred_check_branch
    %14 = sbr.rel (0) target = $region5
  $region4: #{har_forward.1} parent=0 // pred_region
    _
  $region5: #{har_forward.1} parent=0 // pred_fallthru
    _
  // Predicated region
  $region6: #{har_forward.1} parent=0 // pred_check
    _
  $region7: #{har_forward.1} parent=0 // pred_check_branch
    %16 = sbr.rel (0) target = $region9
  $region8: #{har_forward.1} parent=0 // pred_region
    _
  $region9: #{har_forward.1} parent=0 // pred_fallthru
    _
  // Predicated region
  $region10: #{har_forward.1} parent=0 // pred_check
    _
  $region11: #{har_forward.1} parent=0 // pred_check_branch
    %18 = sbr.rel (0) target = $region13
  $region12: #{har_forward.1} parent=0 // pred_region
    _
  $region13: #{har_forward.1} parent=0 // pred_fallthru
    _
  // Predicated region
  $region14: #{har_forward.1} parent=0 // pred_check
    _
  $region15: #{har_forward.1} parent=0 // pred_check_branch
    %20 = sbr.rel (0) target = $region17
  $region16: #{har_forward.1} parent=0 // pred_region
    _
  $region17: #{har_forward.1} parent=0 // pred_fallthru
    _
  // Predicated region
  $region18: #{har_forward.1} parent=0 // pred_check
    _
  $region19: #{har_forward.1} parent=0 // pred_check_branch
    %22 = sbr.rel (0) target = $region21
  $region20: #{har_forward.1} parent=0 // pred_region
    _
  $region21: #{har_forward.1} parent=0 // pred_fallthru
    _
  // Predicated region
  $region22: #{har_forward.1} parent=0 // pred_check
    _
  $region23: #{har_forward.1} parent=0 // pred_check_branch
    %24 = sbr.rel (0) target = $region25
  $region24: #{har_forward.1} parent=0 // pred_region
    _
  $region25: #{har_forward.1} parent=0 // pred_fallthru
    _
  // Predicated region
  $region26: #{har_forward.1} parent=0 // pred_check
    _
  $region27: #{har_forward.1} parent=0 // pred_check_branch
    %26 = sbr.rel (0) target = $region29
  $region28: #{har_forward.1} parent=0 // pred_region
    _
  $region29: #{har_forward.1} parent=0 // pred_fallthru
    _
  // Predicated region
  $region30: #{har_forward.1} parent=0 // pred_check
    _
  $region31: #{har_forward.1} parent=0 // pred_check_branch
    %28 = sbr.rel (0) target = $region33
  $region32: #{har_forward.1} parent=0 // pred_region
    _
  $region33: #{har_forward.1} parent=0 // pred_fallthru
    _
  %v29 = vlaneseq
  %v30 = vand.u32 %v29, 127
  %v31 = vadd.s32 %v30, 128
  %vm32 = vcmp.lt.s32.totalorder %v30, 0
  %v33 = vsub.s32 0, %v30
  %v34 = vsel %vm32, %v33, %v30
  %v35 = vshrl.u32 %v34, 6
  %v36 = vand.u32 %v34, 63
  %v37 = vsub.s32 0, %v36
  %v38 = vsel %vm32, %v37, %v36
  %vm39 = vcmp.lt.s32.totalorder %v31, 0
  %v40 = vsub.s32 0, %v31
  %v41 = vsel %vm39, %v40, %v31
  %v42 = vshrl.u32 %v41, 6
  %v43 = vand.u32 %v41, 63
  %v44 = vsub.s32 0, %v43
  %v45 = vsel %vm39, %v44, %v43
  %vm46 = vcmp.ne.s32.totalorder %v38, 0
  %vm47 = vcmp.ne.s32.totalorder %v45, 0
  %vm48 = vcmp.lt.s32.totalorder %v38, 0
  %vm49 = vcmp.lt.s32.totalorder %v45, 0
  %vm50 = vmand %vm48, %vm46
  %vm51 = vmand %vm49, %vm47
  %v52 = vadd.s32 %v38, 64
  %v53 = vadd.s32 %v45, 64
  %v54 = vsel %vm50, %v52, %v38
  %v55 = vsel %vm51, %v53, %v45
  %v56 = vld [vmem:[%s0] sm:$0xff]
  %v57 = vld [vmem:[%s0 + $0x8] sm:$0xff]
  %vm58 = vcmp.ne.s32.totalorder %v54, 0
  %vm59 = vcmp.ne.s32.totalorder %v55, 0
  %60 = vrot.lane.b32.xlu0 %v56, 1
  %v61 = vpop.permute.xlu0 %60
  %62 = vrot.lane.b32.xlu0 %v57, 1
  %v63 = vpop.permute.xlu0 %62
  %vm64 = vcmp.lt.s32.totalorder %v30, 1
  %v65 = vsel %vm64, %v61, %v63
  %v66 = vsel %vm64, %v63, %v61
  %v67 = vsel %vm58, %v66, 0.0
  %v68 = vsel %vm59, %v65, 0.0
  %vm69 = vcmp.ne.s32.totalorder %v54, 63
  %vm70 = vcmp.ne.s32.totalorder %v55, 63
  %71 = vrot.lane.b32.xlu0 %v56, 127
  %v72 = vpop.permute.xlu0 %71
  %73 = vrot.lane.b32.xlu0 %v57, 127
  %v74 = vpop.permute.xlu0 %73
  %vm75 = vcmp.lt.s32.totalorder %v30, 127
  %v76 = vsel %vm75, %v72, %v74
  %v77 = vsel %vm75, %v74, %v72
  %v78 = vsel %vm69, %v76, 0.0
  %v79 = vsel %vm70, %v77, 0.0
  %v80 = vld [vmem:[%s1] sm:$0xff]
  %v81 = vld [vmem:[%s1 + $0x8] sm:$0xff]
  %v82 = vld [vmem:[%s1 + $0x10] sm:$0xff]
  %v83 = vld [vmem:[%s1 + $0x18] sm:$0xff]
  %v84 = vld [vmem:[%s1 + $0x20] sm:$0xff]
  %v85 = vld [vmem:[%s1 + $0x28] sm:$0xff]
  %v86 = vld [vmem:[%s1 + $0x30] sm:$0xff]
  %v87 = vld [vmem:[%s1 + $0x38] sm:$0xff]
  %v88 = vld [vmem:[%s2] sm:$0xff]
  %v89 = vld [vmem:[%s2 + $0x8] sm:$0xff]
  %v90 = vld [vmem:[%s2 + $0x10] sm:$0xff]
  %v91 = vld [vmem:[%s2 + $0x18] sm:$0xff]
  %v92 = vld [vmem:[%s2 + $0x20] sm:$0xff]
  %v93 = vld [vmem:[%s2 + $0x28] sm:$0xff]
  %v94 = vld [vmem:[%s2 + $0x30] sm:$0xff]
  %v95 = vld [vmem:[%s2 + $0x38] sm:$0xff]
  %97 = vset.pattern.permute.xlu0 0
  %98 = vperm.xlu0 %97, %v88
  %v99 = vpop.permute.xlu0 %98
  %102 = vset.pattern.permute.xlu0 0
  %103 = vperm.xlu0 %102, %v89
  %v104 = vpop.permute.xlu0 %103
  %107 = vset.pattern.permute.xlu0 0
  %108 = vperm.xlu0 %107, %v90
  %v109 = vpop.permute.xlu0 %108
  %112 = vset.pattern.permute.xlu0 0
  %113 = vperm.xlu0 %112, %v91
  %v114 = vpop.permute.xlu0 %113
  %117 = vset.pattern.permute.xlu0 0
  %118 = vperm.xlu0 %117, %v92
  %v119 = vpop.permute.xlu0 %118
  %122 = vset.pattern.permute.xlu0 0
  %123 = vperm.xlu0 %122, %v93
  %v124 = vpop.permute.xlu0 %123
  %127 = vset.pattern.permute.xlu0 0
  %128 = vperm.xlu0 %127, %v94
  %v129 = vpop.permute.xlu0 %128
  %132 = vset.pattern.permute.xlu0 0
  %133 = vperm.xlu0 %132, %v95
  %v134 = vpop.permute.xlu0 %133
  %vm136 = vcmask 195584
  %v138 = vsel %vm136, %v80, 0
  %v141 = vsel %vm136, %v81, 0
  %v144 = vsel %vm136, %v82, 0
  %v147 = vsel %vm136, %v83, 0
  %v150 = vsel %vm136, %v84, 0
  %v153 = vsel %vm136, %v85, 0
  %v156 = vsel %vm136, %v86, 0
  %v159 = vsel %vm136, %v87, 0
  %161 = vmatprep.subr.mxu0 0.0
  %162 = vmatpush1.msra.mxu0 0.0
  %163 = vmatprep.subr.mxu0 0.0
  %164 = vmatpush1.msra.mxu0 0.0
  %165 = vmatprep.subr.mxu0 0.0
  %166 = vmatpush1.msra.mxu0 0.0
  %167 = vmatprep.subr.mxu0 0.0
  %168 = vmatpush1.msra.mxu0 0.0
  %169 = vmatprep.subr.mxu0 0.0
  %170 = vmatpush1.msra.mxu0 0.0
  %171 = vmatprep.subr.mxu0 0.0
  %172 = vmatpush1.msra.mxu0 0.0
  %173 = vmatprep.subr.mxu0 0.0
  %174 = vmatpush1.msra.mxu0 0.0
  %175 = vmatprep.subr.mxu0 0.0
  %176 = vmatpush1.msra.mxu0 0.0
  %177 = vmatprep.subr.mxu0 0.0
  %178 = vmatpush1.msra.mxu0 0.0
  %179 = vmatprep.subr.mxu0 0.0
  %180 = vmatpush1.msra.mxu0 0.0
  %181 = vmatprep.subr.mxu0 0.0
  %182 = vmatpush1.msra.mxu0 0.0
  %183 = vmatprep.subr.mxu0 0.0
  %184 = vmatpush1.msra.mxu0 0.0
  %185 = vmatprep.subr.mxu0 0.0
  %186 = vmatpush1.msra.mxu0 0.0
  %187 = vmatprep.subr.mxu0 %v79
  %188 = vmatpush1.msra.mxu0 %v78
  %189 = vmatprep.subr.mxu0 %v57
  %190 = vmatpush1.msra.mxu0 %v56
  %191 = vmatprep.subr.mxu0 %v68
  %192 = vmatpush1.msra.mxu0 %v67
  %193 = vmatprep.subr.mxu0 0.0
  %194 = vmatpush2.msra.mxu0 0.0
  %195 = vmatprep.subr.mxu0 0.0
  %196 = vmatpush2.msra.mxu0 0.0
  %197 = vmatprep.subr.mxu0 0.0
  %198 = vmatpush2.msra.mxu0 0.0
  %199 = vmatprep.subr.mxu0 0.0
  %200 = vmatpush2.msra.mxu0 0.0
  %201 = vmatprep.subr.mxu0 0.0
  %202 = vmatpush2.msra.mxu0 0.0
  %203 = vmatprep.subr.mxu0 0.0
  %204 = vmatpush2.msra.mxu0 0.0
  %205 = vmatprep.subr.mxu0 0.0
  %206 = vmatpush2.msra.mxu0 0.0
  %207 = vmatprep.subr.mxu0 0.0
  %208 = vmatpush2.msra.mxu0 0.0
  %209 = vmatprep.subr.mxu0 0.0
  %210 = vmatpush2.msra.mxu0 0.0
  %211 = vmatprep.subr.mxu0 0.0
  %212 = vmatpush2.msra.mxu0 0.0
  %213 = vmatprep.subr.mxu0 0.0
  %214 = vmatpush2.msra.mxu0 0.0
  %215 = vmatprep.subr.mxu0 0.0
  %216 = vmatpush2.msra.mxu0 0.0
  %217 = vmatprep.subr.mxu0 0.0
  %218 = vmatpush2.msra.mxu0 0.0
  %219 = vmatprep.subr.mxu0 0.0
  %220 = vmatpush2.msra.mxu0 0.0
  %221 = vmatprep.subr.mxu0 0.0
  %222 = vmatpush2.msra.mxu0 0.0
  %223 = vmatprep.subr.mxu0 0.0
  %224 = vmatpush2.msra.mxu0 0.0
  %225 = vmatprep.mubr.f32.mxu0 0.0
  %226 = vmatmul.mubr.f32.gmra.mxu0 %v138
  %v227 = vpop.f32.mrf.mxu0
  %v228 = vadd.f32 %v99, %v227
  %v229 = vpop.f32.mrf.mxu0
  %v230 = vadd.f32 %v99, %v229
  %231 = vmatprep.mubr.f32.mxu0 0.0
  %232 = vmatmul.mubr.f32.gmra.mxu0 %v141
  %v233 = vpop.f32.mrf.mxu0
  %v234 = vadd.f32 %v104, %v233
  %v235 = vpop.f32.mrf.mxu0
  %v236 = vadd.f32 %v104, %v235
  %237 = vmatprep.mubr.f32.mxu0 0.0
  %238 = vmatmul.mubr.f32.gmra.mxu0 %v144
  %v239 = vpop.f32.mrf.mxu0
  %v240 = vadd.f32 %v109, %v239
  %v241 = vpop.f32.mrf.mxu0
  %v242 = vadd.f32 %v109, %v241
  %243 = vmatprep.mubr.f32.mxu0 0.0
  %244 = vmatmul.mubr.f32.gmra.mxu0 %v147
  %v245 = vpop.f32.mrf.mxu0
  %v246 = vadd.f32 %v114, %v245
  %v247 = vpop.f32.mrf.mxu0
  %v248 = vadd.f32 %v114, %v247
  %249 = vmatprep.mubr.f32.mxu0 0.0
  %250 = vmatmul.mubr.f32.gmra.mxu0 %v150
  %v251 = vpop.f32.mrf.mxu0
  %v252 = vadd.f32 %v119, %v251
  %v253 = vpop.f32.mrf.mxu0
  %v254 = vadd.f32 %v119, %v253
  %255 = vmatprep.mubr.f32.mxu0 0.0
  %256 = vmatmul.mubr.f32.gmra.mxu0 %v153
  %v257 = vpop.f32.mrf.mxu0
  %v258 = vadd.f32 %v124, %v257
  %v259 = vpop.f32.mrf.mxu0
  %v260 = vadd.f32 %v124, %v259
  %261 = vmatprep.mubr.f32.mxu0 0.0
  %262 = vmatmul.mubr.f32.gmra.mxu0 %v156
  %v263 = vpop.f32.mrf.mxu0
  %v264 = vadd.f32 %v129, %v263
  %v265 = vpop.f32.mrf.mxu0
  %v266 = vadd.f32 %v129, %v265
  %267 = vmatprep.mubr.f32.mxu0 0.0
  %268 = vmatmul.mubr.f32.gmra.mxu0 %v159
  %v269 = vpop.f32.mrf.mxu0
  %v270 = vadd.f32 %v134, %v269
  %v271 = vpop.f32.mrf.mxu0
  %v272 = vadd.f32 %v134, %v271
  %273 = vdwg.mxu0
  %v274 = vmax.f32 %v228, 0.0
  %v275 = vmax.f32 %v230, 0.0
  %v276 = vmax.f32 %v234, 0.0
  %v277 = vmax.f32 %v236, 0.0
  %v278 = vmax.f32 %v240, 0.0
  %v279 = vmax.f32 %v242, 0.0
  %v280 = vmax.f32 %v246, 0.0
  %v281 = vmax.f32 %v248, 0.0
  %v282 = vmax.f32 %v252, 0.0
  %v283 = vmax.f32 %v254, 0.0
  %v284 = vmax.f32 %v258, 0.0
  %v285 = vmax.f32 %v260, 0.0
  %v286 = vmax.f32 %v264, 0.0
  %v287 = vmax.f32 %v266, 0.0
  %v288 = vmax.f32 %v270, 0.0
  %v289 = vmax.f32 %v272, 0.0
  %v290 = vld [vmem:[%s3] sm:$0xff]
  %v291 = vld [vmem:[%s3 + $0x8] sm:$0xff]
  %v292 = vld [vmem:[%s3 + $0x10] sm:$0xff]
  %v293 = vld [vmem:[%s3 + $0x18] sm:$0xff]
  %v294 = vld [vmem:[%s3 + $0x20] sm:$0xff]
  %v295 = vld [vmem:[%s3 + $0x28] sm:$0xff]
  %v296 = vld [vmem:[%s3 + $0x30] sm:$0xff]
  %v297 = vld [vmem:[%s3 + $0x38] sm:$0xff]
  %vm298 = vcmask 523264
  %v300 = vsel %vm298, %v290, 0
  %v303 = vsel %vm298, %v291, 0
  %v306 = vsel %vm298, %v292, 0
  %v309 = vsel %vm298, %v293, 0
  %v312 = vsel %vm298, %v294, 0
  %v315 = vsel %vm298, %v295, 0
  %v318 = vsel %vm298, %v296, 0
  %v321 = vsel %vm298, %v297, 0
  %323 = vmatprep.subr.mxu0 0.0
  %324 = vmatpush1.msra.mxu0 0.0
  %325 = vmatprep.subr.mxu0 0.0
  %326 = vmatpush1.msra.mxu0 0.0
  %327 = vmatprep.subr.mxu0 0.0
  %328 = vmatpush1.msra.mxu0 0.0
  %329 = vmatprep.subr.mxu0 0.0
  %330 = vmatpush1.msra.mxu0 0.0
  %331 = vmatprep.subr.mxu0 0.0
  %332 = vmatpush1.msra.mxu0 0.0
  %333 = vmatprep.subr.mxu0 0.0
  %334 = vmatpush1.msra.mxu0 0.0
  %335 = vmatprep.subr.mxu0 0.0
  %336 = vmatpush1.msra.mxu0 0.0
  %337 = vmatprep.subr.mxu0 0.0
  %338 = vmatpush1.msra.mxu0 0.0
  %339 = vmatprep.subr.mxu0 %v289
  %340 = vmatpush1.msra.mxu0 %v288
  %341 = vmatprep.subr.mxu0 %v287
  %342 = vmatpush1.msra.mxu0 %v286
  %343 = vmatprep.subr.mxu0 %v285
  %344 = vmatpush1.msra.mxu0 %v284
  %345 = vmatprep.subr.mxu0 %v283
  %346 = vmatpush1.msra.mxu0 %v282
  %347 = vmatprep.subr.mxu0 %v281
  %348 = vmatpush1.msra.mxu0 %v280
  %349 = vmatprep.subr.mxu0 %v279
  %350 = vmatpush1.msra.mxu0 %v278
  %351 = vmatprep.subr.mxu0 %v277
  %352 = vmatpush1.msra.mxu0 %v276
  %353 = vmatprep.subr.mxu0 %v275
  %354 = vmatpush1.msra.mxu0 %v274
  %355 = vmatprep.subr.mxu0 0.0
  %356 = vmatpush2.msra.mxu0 0.0
  %357 = vmatprep.subr.mxu0 0.0
  %358 = vmatpush2.msra.mxu0 0.0
  %359 = vmatprep.subr.mxu0 0.0
  %360 = vmatpush2.msra.mxu0 0.0
  %361 = vmatprep.subr.mxu0 0.0
  %362 = vmatpush2.msra.mxu0 0.0
  %363 = vmatprep.subr.mxu0 0.0
  %364 = vmatpush2.msra.mxu0 0.0
  %365 = vmatprep.subr.mxu0 0.0
  %366 = vmatpush2.msra.mxu0 0.0
  %367 = vmatprep.subr.mxu0 0.0
  %368 = vmatpush2.msra.mxu0 0.0
  %369 = vmatprep.subr.mxu0 0.0
  %370 = vmatpush2.msra.mxu0 0.0
  %371 = vmatprep.subr.mxu0 0.0
  %372 = vmatpush2.msra.mxu0 0.0
  %373 = vmatprep.subr.mxu0 0.0
  %374 = vmatpush2.msra.mxu0 0.0
  %375 = vmatprep.subr.mxu0 0.0
  %376 = vmatpush2.msra.mxu0 0.0
  %377 = vmatprep.subr.mxu0 0.0
  %378 = vmatpush2.msra.mxu0 0.0
  %379 = vmatprep.subr.mxu0 0.0
  %380 = vmatpush2.msra.mxu0 0.0
  %381 = vmatprep.subr.mxu0 0.0
  %382 = vmatpush2.msra.mxu0 0.0
  %383 = vmatprep.subr.mxu0 0.0
  %384 = vmatpush2.msra.mxu0 0.0
  %385 = vmatprep.subr.mxu0 0.0
  %386 = vmatpush2.msra.mxu0 0.0
  %387 = vmatprep.mubr.f32.mxu0 0.0
  %388 = vmatmul.mubr.f32.gmra.mxu0 %v300
  %v389 = vpop.f32.mrf.mxu0
  %v390 = vadd.f32 0.0, %v389
  %v391 = vpop.f32.mrf.mxu0
  %v392 = vadd.f32 0.0, %v391
  %393 = vmatprep.mubr.f32.mxu0 0.0
  %394 = vmatmul.mubr.f32.gmra.mxu0 %v303
  %v395 = vpop.f32.mrf.mxu0
  %v396 = vadd.f32 0.0, %v395
  %v397 = vpop.f32.mrf.mxu0
  %v398 = vadd.f32 0.0, %v397
  %399 = vmatprep.mubr.f32.mxu0 0.0
  %400 = vmatmul.mubr.f32.gmra.mxu0 %v306
  %v401 = vpop.f32.mrf.mxu0
  %v402 = vadd.f32 0.0, %v401
  %v403 = vpop.f32.mrf.mxu0
  %v404 = vadd.f32 0.0, %v403
  %405 = vmatprep.mubr.f32.mxu0 0.0
  %406 = vmatmul.mubr.f32.gmra.mxu0 %v309
  %v407 = vpop.f32.mrf.mxu0
  %v408 = vadd.f32 0.0, %v407
  %v409 = vpop.f32.mrf.mxu0
  %v410 = vadd.f32 0.0, %v409
  %411 = vmatprep.mubr.f32.mxu0 0.0
  %412 = vmatmul.mubr.f32.gmra.mxu0 %v312
  %v413 = vpop.f32.mrf.mxu0
  %v414 = vadd.f32 0.0, %v413
  %v415 = vpop.f32.mrf.mxu0
  %v416 = vadd.f32 0.0, %v415
  %417 = vmatprep.mubr.f32.mxu0 0.0
  %418 = vmatmul.mubr.f32.gmra.mxu0 %v315
  %v419 = vpop.f32.mrf.mxu0
  %v420 = vadd.f32 0.0, %v419
  %v421 = vpop.f32.mrf.mxu0
  %v422 = vadd.f32 0.0, %v421
  %423 = vmatprep.mubr.f32.mxu0 0.0
  %424 = vmatmul.mubr.f32.gmra.mxu0 %v318
  %v425 = vpop.f32.mrf.mxu0
  %v426 = vadd.f32 0.0, %v425
  %v427 = vpop.f32.mrf.mxu0
  %v428 = vadd.f32 0.0, %v427
  %429 = vmatprep.mubr.f32.mxu0 0.0
  %430 = vmatmul.mubr.f32.gmra.mxu0 %v321
  %v431 = vpop.f32.mrf.mxu0
  %v432 = vadd.f32 0.0, %v431
  %v433 = vpop.f32.mrf.mxu0
  %v434 = vadd.f32 0.0, %v433
  %435 = vdwg.mxu0
  %s436 = scalar_lea.vmem %s3, 64
  %v437 = vld [vmem:[%s436] sm:$0xff]
  %v438 = vld [vmem:[%s436 + $0x8] sm:$0xff]
  %v439 = vld [vmem:[%s436 + $0x10] sm:$0xff]
  %v440 = vld [vmem:[%s436 + $0x18] sm:$0xff]
  %v441 = vld [vmem:[%s436 + $0x20] sm:$0xff]
  %v442 = vld [vmem:[%s436 + $0x28] sm:$0xff]
  %v443 = vld [vmem:[%s436 + $0x30] sm:$0xff]
  %v444 = vld [vmem:[%s436 + $0x38] sm:$0xff]
  %s445 = scalar_lea.vmem %s3, 128
  %v446 = vld [vmem:[%s445] sm:$0xff]
  %v447 = vld [vmem:[%s445 + $0x8] sm:$0xff]
  %v448 = vld [vmem:[%s445 + $0x10] sm:$0xff]
  %v449 = vld [vmem:[%s445 + $0x18] sm:$0xff]
  %v450 = vld [vmem:[%s445 + $0x20] sm:$0xff]
  %v451 = vld [vmem:[%s445 + $0x28] sm:$0xff]
  %v452 = vld [vmem:[%s445 + $0x30] sm:$0xff]
  %v453 = vld [vmem:[%s445 + $0x38] sm:$0xff]
  %v455 = vsel %vm298, %v446, 0
  %v458 = vsel %vm298, %v447, 0
  %v461 = vsel %vm298, %v448, 0
  %v464 = vsel %vm298, %v449, 0
  %v467 = vsel %vm298, %v450, 0
  %v470 = vsel %vm298, %v451, 0
  %v473 = vsel %vm298, %v452, 0
  %v476 = vsel %vm298, %v453, 0
  %478 = vmatprep.subr.mxu0 0.0
  %479 = vmatpush1.msra.mxu0 0.0
  %480 = vmatprep.subr.mxu0 0.0
  %481 = vmatpush1.msra.mxu0 0.0
  %482 = vmatprep.subr.mxu0 0.0
  %483 = vmatpush1.msra.mxu0 0.0
  %484 = vmatprep.subr.mxu0 0.0
  %485 = vmatpush1.msra.mxu0 0.0
  %486 = vmatprep.subr.mxu0 0.0
  %487 = vmatpush1.msra.mxu0 0.0
  %488 = vmatprep.subr.mxu0 0.0
  %489 = vmatpush1.msra.mxu0 0.0
  %490 = vmatprep.subr.mxu0 0.0
  %491 = vmatpush1.msra.mxu0 0.0
  %492 = vmatprep.subr.mxu0 0.0
  %493 = vmatpush1.msra.mxu0 0.0
  %494 = vmatprep.subr.mxu0 %v289
  %495 = vmatpush1.msra.mxu0 %v288
  %496 = vmatprep.subr.mxu0 %v287
  %497 = vmatpush1.msra.mxu0 %v286
  %498 = vmatprep.subr.mxu0 %v285
  %499 = vmatpush1.msra.mxu0 %v284
  %500 = vmatprep.subr.mxu0 %v283
  %501 = vmatpush1.msra.mxu0 %v282
  %502 = vmatprep.subr.mxu0 %v281
  %503 = vmatpush1.msra.mxu0 %v280
  %504 = vmatprep.subr.mxu0 %v279
  %505 = vmatpush1.msra.mxu0 %v278
  %506 = vmatprep.subr.mxu0 %v277
  %507 = vmatpush1.msra.mxu0 %v276
  %508 = vmatprep.subr.mxu0 %v275
  %509 = vmatpush1.msra.mxu0 %v274
  %510 = vmatprep.subr.mxu0 0.0
  %511 = vmatpush2.msra.mxu0 0.0
  %512 = vmatprep.subr.mxu0 0.0
  %513 = vmatpush2.msra.mxu0 0.0
  %514 = vmatprep.subr.mxu0 0.0
  %515 = vmatpush2.msra.mxu0 0.0
  %516 = vmatprep.subr.mxu0 0.0
  %517 = vmatpush2.msra.mxu0 0.0
  %518 = vmatprep.subr.mxu0 0.0
  %519 = vmatpush2.msra.mxu0 0.0
  %520 = vmatprep.subr.mxu0 0.0
  %521 = vmatpush2.msra.mxu0 0.0
  %522 = vmatprep.subr.mxu0 0.0
  %523 = vmatpush2.msra.mxu0 0.0
  %524 = vmatprep.subr.mxu0 0.0
  %525 = vmatpush2.msra.mxu0 0.0
  %526 = vmatprep.subr.mxu0 0.0
  %527 = vmatpush2.msra.mxu0 0.0
  %528 = vmatprep.subr.mxu0 0.0
  %529 = vmatpush2.msra.mxu0 0.0
  %530 = vmatprep.subr.mxu0 0.0
  %531 = vmatpush2.msra.mxu0 0.0
  %532 = vmatprep.subr.mxu0 0.0
  %533 = vmatpush2.msra.mxu0 0.0
  %534 = vmatprep.subr.mxu0 0.0
  %535 = vmatpush2.msra.mxu0 0.0
  %536 = vmatprep.subr.mxu0 0.0
  %537 = vmatpush2.msra.mxu0 0.0
  %538 = vmatprep.subr.mxu0 0.0
  %539 = vmatpush2.msra.mxu0 0.0
  %540 = vmatprep.subr.mxu0 0.0
  %541 = vmatpush2.msra.mxu0 0.0
  %542 = vmatprep.mubr.f32.mxu0 0.0
  %543 = vmatmul.mubr.f32.gmra.mxu0 %v455
  %v544 = vpop.f32.mrf.mxu0
  %v545 = vadd.f32 0.0, %v544
  %v546 = vpop.f32.mrf.mxu0
  %v547 = vadd.f32 0.0, %v546
  %548 = vmatprep.mubr.f32.mxu0 0.0
  %549 = vmatmul.mubr.f32.gmra.mxu0 %v458
  %v550 = vpop.f32.mrf.mxu0
  %v551 = vadd.f32 0.0, %v550
  %v552 = vpop.f32.mrf.mxu0
  %v553 = vadd.f32 0.0, %v552
  %554 = vmatprep.mubr.f32.mxu0 0.0
  %555 = vmatmul.mubr.f32.gmra.mxu0 %v461
  %v556 = vpop.f32.mrf.mxu0
  %v557 = vadd.f32 0.0, %v556
  %v558 = vpop.f32.mrf.mxu0
  %v559 = vadd.f32 0.0, %v558
  %560 = vmatprep.mubr.f32.mxu0 0.0
  %561 = vmatmul.mubr.f32.gmra.mxu0 %v464
  %v562 = vpop.f32.mrf.mxu0
  %v563 = vadd.f32 0.0, %v562
  %v564 = vpop.f32.mrf.mxu0
  %v565 = vadd.f32 0.0, %v564
  %566 = vmatprep.mubr.f32.mxu0 0.0
  %567 = vmatmul.mubr.f32.gmra.mxu0 %v467
  %v568 = vpop.f32.mrf.mxu0
  %v569 = vadd.f32 0.0, %v568
  %v570 = vpop.f32.mrf.mxu0
  %v571 = vadd.f32 0.0, %v570
  %572 = vmatprep.mubr.f32.mxu0 0.0
  %573 = vmatmul.mubr.f32.gmra.mxu0 %v470
  %v574 = vpop.f32.mrf.mxu0
  %v575 = vadd.f32 0.0, %v574
  %v576 = vpop.f32.mrf.mxu0
  %v577 = vadd.f32 0.0, %v576
  %578 = vmatprep.mubr.f32.mxu0 0.0
  %579 = vmatmul.mubr.f32.gmra.mxu0 %v473
  %v580 = vpop.f32.mrf.mxu0
  %v581 = vadd.f32 0.0, %v580
  %v582 = vpop.f32.mrf.mxu0
  %v583 = vadd.f32 0.0, %v582
  %584 = vmatprep.mubr.f32.mxu0 0.0
  %585 = vmatmul.mubr.f32.gmra.mxu0 %v476
  %v586 = vpop.f32.mrf.mxu0
  %v587 = vadd.f32 0.0, %v586
  %v588 = vpop.f32.mrf.mxu0
  %v589 = vadd.f32 0.0, %v588
  %590 = vdwg.mxu0
  %v591 = vld [vmem:[%s4] sm:$0xff]
  %v592 = vld [vmem:[%s4 + $0x8] sm:$0xff]
  %v593 = vld [vmem:[%s4 + $0x10] sm:$0xff]
  %v594 = vld [vmem:[%s4 + $0x18] sm:$0xff]
  %v595 = vld [vmem:[%s4 + $0x20] sm:$0xff]
  %v596 = vld [vmem:[%s4 + $0x28] sm:$0xff]
  %v597 = vld [vmem:[%s4 + $0x30] sm:$0xff]
  %v598 = vld [vmem:[%s4 + $0x38] sm:$0xff]
  %600 = vset.pattern.permute.xlu0 0
  %601 = vperm.xlu0 %600, %v591
  %v602 = vpop.permute.xlu0 %601
  %605 = vset.pattern.permute.xlu0 0
  %606 = vperm.xlu0 %605, %v592
  %v607 = vpop.permute.xlu0 %606
  %610 = vset.pattern.permute.xlu0 0
  %611 = vperm.xlu0 %610, %v593
  %v612 = vpop.permute.xlu0 %611
  %615 = vset.pattern.permute.xlu0 0
  %616 = vperm.xlu0 %615, %v594
  %v617 = vpop.permute.xlu0 %616
  %620 = vset.pattern.permute.xlu0 0
  %621 = vperm.xlu0 %620, %v595
  %v622 = vpop.permute.xlu0 %621
  %625 = vset.pattern.permute.xlu0 0
  %626 = vperm.xlu0 %625, %v596
  %v627 = vpop.permute.xlu0 %626
  %630 = vset.pattern.permute.xlu0 0
  %631 = vperm.xlu0 %630, %v597
  %v632 = vpop.permute.xlu0 %631
  %635 = vset.pattern.permute.xlu0 0
  %636 = vperm.xlu0 %635, %v598
  %v637 = vpop.permute.xlu0 %636
  %v640 = vsel %vm298, %v437, 0
  %v643 = vsel %vm298, %v438, 0
  %v646 = vsel %vm298, %v439, 0
  %v649 = vsel %vm298, %v440, 0
  %v652 = vsel %vm298, %v441, 0
  %v655 = vsel %vm298, %v442, 0
  %v658 = vsel %vm298, %v443, 0
  %v661 = vsel %vm298, %v444, 0
  %663 = vmatprep.subr.mxu0 0.0
  %664 = vmatpush1.msra.mxu0 0.0
  %665 = vmatprep.subr.mxu0 0.0
  %666 = vmatpush1.msra.mxu0 0.0
  %667 = vmatprep.subr.mxu0 0.0
  %668 = vmatpush1.msra.mxu0 0.0
  %669 = vmatprep.subr.mxu0 0.0
  %670 = vmatpush1.msra.mxu0 0.0
  %671 = vmatprep.subr.mxu0 0.0
  %672 = vmatpush1.msra.mxu0 0.0
  %673 = vmatprep.subr.mxu0 0.0
  %674 = vmatpush1.msra.mxu0 0.0
  %675 = vmatprep.subr.mxu0 0.0
  %676 = vmatpush1.msra.mxu0 0.0
  %677 = vmatprep.subr.mxu0 0.0
  %678 = vmatpush1.msra.mxu0 0.0
  %679 = vmatprep.subr.mxu0 %v289
  %680 = vmatpush1.msra.mxu0 %v288
  %681 = vmatprep.subr.mxu0 %v287
  %682 = vmatpush1.msra.mxu0 %v286
  %683 = vmatprep.subr.mxu0 %v285
  %684 = vmatpush1.msra.mxu0 %v284
  %685 = vmatprep.subr.mxu0 %v283
  %686 = vmatpush1.msra.mxu0 %v282
  %687 = vmatprep.subr.mxu0 %v281
  %688 = vmatpush1.msra.mxu0 %v280
  %689 = vmatprep.subr.mxu0 %v279
  %690 = vmatpush1.msra.mxu0 %v278
  %691 = vmatprep.subr.mxu0 %v277
  %692 = vmatpush1.msra.mxu0 %v276
  %693 = vmatprep.subr.mxu0 %v275
  %694 = vmatpush1.msra.mxu0 %v274
  %695 = vmatprep.subr.mxu0 0.0
  %696 = vmatpush2.msra.mxu0 0.0
  %697 = vmatprep.subr.mxu0 0.0
  %698 = vmatpush2.msra.mxu0 0.0
  %699 = vmatprep.subr.mxu0 0.0
  %700 = vmatpush2.msra.mxu0 0.0
  %701 = vmatprep.subr.mxu0 0.0
  %702 = vmatpush2.msra.mxu0 0.0
  %703 = vmatprep.subr.mxu0 0.0
  %704 = vmatpush2.msra.mxu0 0.0
  %705 = vmatprep.subr.mxu0 0.0
  %706 = vmatpush2.msra.mxu0 0.0
  %707 = vmatprep.subr.mxu0 0.0
  %708 = vmatpush2.msra.mxu0 0.0
  %709 = vmatprep.subr.mxu0 0.0
  %710 = vmatpush2.msra.mxu0 0.0
  %711 = vmatprep.subr.mxu0 0.0
  %712 = vmatpush2.msra.mxu0 0.0
  %713 = vmatprep.subr.mxu0 0.0
  %714 = vmatpush2.msra.mxu0 0.0
  %715 = vmatprep.subr.mxu0 0.0
  %716 = vmatpush2.msra.mxu0 0.0
  %717 = vmatprep.subr.mxu0 0.0
  %718 = vmatpush2.msra.mxu0 0.0
  %719 = vmatprep.subr.mxu0 0.0
  %720 = vmatpush2.msra.mxu0 0.0
  %721 = vmatprep.subr.mxu0 0.0
  %722 = vmatpush2.msra.mxu0 0.0
  %723 = vmatprep.subr.mxu0 0.0
  %724 = vmatpush2.msra.mxu0 0.0
  %725 = vmatprep.subr.mxu0 0.0
  %726 = vmatpush2.msra.mxu0 0.0
  %727 = vmatprep.mubr.f32.mxu0 0.0
  %728 = vmatmul.mubr.f32.gmra.mxu0 %v640
  %v729 = vpop.f32.mrf.mxu0
  %v730 = vadd.f32 %v602, %v729
  %v731 = vpop.f32.mrf.mxu0
  %v732 = vadd.f32 %v602, %v731
  %733 = vmatprep.mubr.f32.mxu0 0.0
  %734 = vmatmul.mubr.f32.gmra.mxu0 %v643
  %v735 = vpop.f32.mrf.mxu0
  %v736 = vadd.f32 %v607, %v735
  %v737 = vpop.f32.mrf.mxu0
  %v738 = vadd.f32 %v607, %v737
  %739 = vmatprep.mubr.f32.mxu0 0.0
  %740 = vmatmul.mubr.f32.gmra.mxu0 %v646
  %v741 = vpop.f32.mrf.mxu0
  %v742 = vadd.f32 %v612, %v741
  %v743 = vpop.f32.mrf.mxu0
  %v744 = vadd.f32 %v612, %v743
  %745 = vmatprep.mubr.f32.mxu0 0.0
  %746 = vmatmul.mubr.f32.gmra.mxu0 %v649
  %v747 = vpop.f32.mrf.mxu0
  %v748 = vadd.f32 %v617, %v747
  %v749 = vpop.f32.mrf.mxu0
  %v750 = vadd.f32 %v617, %v749
  %751 = vmatprep.mubr.f32.mxu0 0.0
  %752 = vmatmul.mubr.f32.gmra.mxu0 %v652
  %v753 = vpop.f32.mrf.mxu0
  %v754 = vadd.f32 %v622, %v753
  %v755 = vpop.f32.mrf.mxu0
  %v756 = vadd.f32 %v622, %v755
  %757 = vmatprep.mubr.f32.mxu0 0.0
  %758 = vmatmul.mubr.f32.gmra.mxu0 %v655
  %v759 = vpop.f32.mrf.mxu0
  %v760 = vadd.f32 %v627, %v759
  %v761 = vpop.f32.mrf.mxu0
  %v762 = vadd.f32 %v627, %v761
  %763 = vmatprep.mubr.f32.mxu0 0.0
  %764 = vmatmul.mubr.f32.gmra.mxu0 %v658
  %v765 = vpop.f32.mrf.mxu0
  %v766 = vadd.f32 %v632, %v765
  %v767 = vpop.f32.mrf.mxu0
  %v768 = vadd.f32 %v632, %v767
  %769 = vmatprep.mubr.f32.mxu0 0.0
  %770 = vmatmul.mubr.f32.gmra.mxu0 %v661
  %v771 = vpop.f32.mrf.mxu0
  %v772 = vadd.f32 %v637, %v771
  %v773 = vpop.f32.mrf.mxu0
  %v774 = vadd.f32 %v637, %v773
  %775 = vdwg.mxu0
  %776 = vrot.lane.b32.xlu0 %v390, 1
  %v777 = vpop.permute.xlu0 %776
  %778 = vrot.lane.b32.xlu0 %v396, 1
  %v779 = vpop.permute.xlu0 %778
  %780 = vrot.lane.b32.xlu0 %v402, 1
  %v781 = vpop.permute.xlu0 %780
  %782 = vrot.lane.b32.xlu0 %v408, 1
  %v783 = vpop.permute.xlu0 %782
  %784 = vrot.lane.b32.xlu0 %v414, 1
  %v785 = vpop.permute.xlu0 %784
  %786 = vrot.lane.b32.xlu0 %v420, 1
  %v787 = vpop.permute.xlu0 %786
  %788 = vrot.lane.b32.xlu0 %v426, 1
  %v789 = vpop.permute.xlu0 %788
  %790 = vrot.lane.b32.xlu0 %v432, 1
  %v791 = vpop.permute.xlu0 %790
  %792 = vrot.lane.b32.xlu0 %v392, 1
  %v793 = vpop.permute.xlu0 %792
  %794 = vrot.lane.b32.xlu0 %v398, 1
  %v795 = vpop.permute.xlu0 %794
  %796 = vrot.lane.b32.xlu0 %v404, 1
  %v797 = vpop.permute.xlu0 %796
  %798 = vrot.lane.b32.xlu0 %v410, 1
  %v799 = vpop.permute.xlu0 %798
  %800 = vrot.lane.b32.xlu0 %v416, 1
  %v801 = vpop.permute.xlu0 %800
  %802 = vrot.lane.b32.xlu0 %v422, 1
  %v803 = vpop.permute.xlu0 %802
  %804 = vrot.lane.b32.xlu0 %v428, 1
  %v805 = vpop.permute.xlu0 %804
  %806 = vrot.lane.b32.xlu0 %v434, 1
  %v807 = vpop.permute.xlu0 %806
  %v808 = vsel %vm64, %v777, %v793
  %v809 = vsel %vm64, %v779, %v795
  %v810 = vsel %vm64, %v781, %v797
  %v811 = vsel %vm64, %v783, %v799
  %v812 = vsel %vm64, %v785, %v801
  %v813 = vsel %vm64, %v787, %v803
  %v814 = vsel %vm64, %v789, %v805
  %v815 = vsel %vm64, %v791, %v807
  %v816 = vsel %vm64, %v793, %v777
  %v817 = vsel %vm64, %v795, %v779
  %v818 = vsel %vm64, %v797, %v781
  %v819 = vsel %vm64, %v799, %v783
  %v820 = vsel %vm64, %v801, %v785
  %v821 = vsel %vm64, %v803, %v787
  %v822 = vsel %vm64, %v805, %v789
  %v823 = vsel %vm64, %v807, %v791
  %v824 = vsel %vm58, %v816, 0.0
  %v825 = vsel %vm59, %v808, 0.0
  %v826 = vsel %vm58, %v817, 0.0
  %v827 = vsel %vm59, %v809, 0.0
  %v828 = vsel %vm58, %v818, 0.0
  %v829 = vsel %vm59, %v810, 0.0
  %v830 = vsel %vm58, %v819, 0.0
  %v831 = vsel %vm59, %v811, 0.0
  %v832 = vsel %vm58, %v820, 0.0
  %v833 = vsel %vm59, %v812, 0.0
  %v834 = vsel %vm58, %v821, 0.0
  %v835 = vsel %vm59, %v813, 0.0
  %v836 = vsel %vm58, %v822, 0.0
  %v837 = vsel %vm59, %v814, 0.0
  %v838 = vsel %vm58, %v823, 0.0
  %v839 = vsel %vm59, %v815, 0.0
  %v840 = vadd.f32 %v730, %v824
  %v841 = vadd.f32 %v732, %v825
  %v842 = vadd.f32 %v736, %v826
  %v843 = vadd.f32 %v738, %v827
  %v844 = vadd.f32 %v742, %v828
  %v845 = vadd.f32 %v744, %v829
  %v846 = vadd.f32 %v748, %v830
  %v847 = vadd.f32 %v750, %v831
  %v848 = vadd.f32 %v754, %v832
  %v849 = vadd.f32 %v756, %v833
  %v850 = vadd.f32 %v760, %v834
  %v851 = vadd.f32 %v762, %v835
  %v852 = vadd.f32 %v766, %v836
  %v853 = vadd.f32 %v768, %v837
  %v854 = vadd.f32 %v772, %v838
  %v855 = vadd.f32 %v774, %v839
  %856 = vrot.lane.b32.xlu0 %v545, 127
  %v857 = vpop.permute.xlu0 %856
  %858 = vrot.lane.b32.xlu0 %v551, 127
  %v859 = vpop.permute.xlu0 %858
  %860 = vrot.lane.b32.xlu0 %v557, 127
  %v861 = vpop.permute.xlu0 %860
  %862 = vrot.lane.b32.xlu0 %v563, 127
  %v863 = vpop.permute.xlu0 %862
  %864 = vrot.lane.b32.xlu0 %v569, 127
  %v865 = vpop.permute.xlu0 %864
  %866 = vrot.lane.b32.xlu0 %v575, 127
  %v867 = vpop.permute.xlu0 %866
  %868 = vrot.lane.b32.xlu0 %v581, 127
  %v869 = vpop.permute.xlu0 %868
  %870 = vrot.lane.b32.xlu0 %v587, 127
  %v871 = vpop.permute.xlu0 %870
  %872 = vrot.lane.b32.xlu0 %v547, 127
  %v873 = vpop.permute.xlu0 %872
  %874 = vrot.lane.b32.xlu0 %v553, 127
  %v875 = vpop.permute.xlu0 %874
  %876 = vrot.lane.b32.xlu0 %v559, 127
  %v877 = vpop.permute.xlu0 %876
  %878 = vrot.lane.b32.xlu0 %v565, 127
  %v879 = vpop.permute.xlu0 %878
  %880 = vrot.lane.b32.xlu0 %v571, 127
  %v881 = vpop.permute.xlu0 %880
  %882 = vrot.lane.b32.xlu0 %v577, 127
  %v883 = vpop.permute.xlu0 %882
  %884 = vrot.lane.b32.xlu0 %v583, 127
  %v885 = vpop.permute.xlu0 %884
  %886 = vrot.lane.b32.xlu0 %v589, 127
  %v887 = vpop.permute.xlu0 %886
  %v888 = vsel %vm75, %v857, %v873
  %v889 = vsel %vm75, %v859, %v875
  %v890 = vsel %vm75, %v861, %v877
  %v891 = vsel %vm75, %v863, %v879
  %v892 = vsel %vm75, %v865, %v881
  %v893 = vsel %vm75, %v867, %v883
  %v894 = vsel %vm75, %v869, %v885
  %v895 = vsel %vm75, %v871, %v887
  %v896 = vsel %vm75, %v873, %v857
  %v897 = vsel %vm75, %v875, %v859
  %v898 = vsel %vm75, %v877, %v861
  %v899 = vsel %vm75, %v879, %v863
  %v900 = vsel %vm75, %v881, %v865
  %v901 = vsel %vm75, %v883, %v867
  %v902 = vsel %vm75, %v885, %v869
  %v903 = vsel %vm75, %v887, %v871
  %v904 = vsel %vm69, %v888, 0.0
  %v905 = vsel %vm70, %v896, 0.0
  %v906 = vsel %vm69, %v889, 0.0
  %v907 = vsel %vm70, %v897, 0.0
  %v908 = vsel %vm69, %v890, 0.0
  %v909 = vsel %vm70, %v898, 0.0
  %v910 = vsel %vm69, %v891, 0.0
  %v911 = vsel %vm70, %v899, 0.0
  %v912 = vsel %vm69, %v892, 0.0
  %v913 = vsel %vm70, %v900, 0.0
  %v914 = vsel %vm69, %v893, 0.0
  %v915 = vsel %vm70, %v901, 0.0
  %v916 = vsel %vm69, %v894, 0.0
  %v917 = vsel %vm70, %v902, 0.0
  %v918 = vsel %vm69, %v895, 0.0
  %v919 = vsel %vm70, %v903, 0.0
  %v920 = vadd.f32 %v840, %v904
  %v921 = vadd.f32 %v841, %v905
  %v922 = vadd.f32 %v842, %v906
  %v923 = vadd.f32 %v843, %v907
  %v924 = vadd.f32 %v844, %v908
  %v925 = vadd.f32 %v845, %v909
  %v926 = vadd.f32 %v846, %v910
  %v927 = vadd.f32 %v847, %v911
  %v928 = vadd.f32 %v848, %v912
  %v929 = vadd.f32 %v849, %v913
  %v930 = vadd.f32 %v850, %v914
  %v931 = vadd.f32 %v851, %v915
  %v932 = vadd.f32 %v852, %v916
  %v933 = vadd.f32 %v853, %v917
  %v934 = vadd.f32 %v854, %v918
  %v935 = vadd.f32 %v855, %v919
  %v936 = vmax.f32 %v920, 0.0
  %v937 = vmax.f32 %v921, 0.0
  %v938 = vmax.f32 %v922, 0.0
  %v939 = vmax.f32 %v923, 0.0
  %v940 = vmax.f32 %v924, 0.0
  %v941 = vmax.f32 %v925, 0.0
  %v942 = vmax.f32 %v926, 0.0
  %v943 = vmax.f32 %v927, 0.0
  %v944 = vmax.f32 %v928, 0.0
  %v945 = vmax.f32 %v929, 0.0
  %v946 = vmax.f32 %v930, 0.0
  %v947 = vmax.f32 %v931, 0.0
  %v948 = vmax.f32 %v932, 0.0
  %v949 = vmax.f32 %v933, 0.0
  %v950 = vmax.f32 %v934, 0.0
  %v951 = vmax.f32 %v935, 0.0
  %952 = vrot.lane.b32.xlu0 %v936, 127
  %v953 = vpop.permute.xlu0 %952
  %954 = vrot.lane.b32.xlu0 %v938, 127
  %v955 = vpop.permute.xlu0 %954
  %956 = vrot.lane.b32.xlu0 %v940, 127
  %v957 = vpop.permute.xlu0 %956
  %958 = vrot.lane.b32.xlu0 %v942, 127
  %v959 = vpop.permute.xlu0 %958
  %960 = vrot.lane.b32.xlu0 %v944, 127
  %v961 = vpop.permute.xlu0 %960
  %962 = vrot.lane.b32.xlu0 %v946, 127
  %v963 = vpop.permute.xlu0 %962
  %964 = vrot.lane.b32.xlu0 %v948, 127
  %v965 = vpop.permute.xlu0 %964
  %966 = vrot.lane.b32.xlu0 %v950, 127
  %v967 = vpop.permute.xlu0 %966
  %968 = vrot.lane.b32.xlu0 %v937, 127
  %v969 = vpop.permute.xlu0 %968
  %970 = vrot.lane.b32.xlu0 %v939, 127
  %v971 = vpop.permute.xlu0 %970
  %972 = vrot.lane.b32.xlu0 %v941, 127
  %v973 = vpop.permute.xlu0 %972
  %974 = vrot.lane.b32.xlu0 %v943, 127
  %v975 = vpop.permute.xlu0 %974
  %976 = vrot.lane.b32.xlu0 %v945, 127
  %v977 = vpop.permute.xlu0 %976
  %978 = vrot.lane.b32.xlu0 %v947, 127
  %v979 = vpop.permute.xlu0 %978
  %980 = vrot.lane.b32.xlu0 %v949, 127
  %v981 = vpop.permute.xlu0 %980
  %982 = vrot.lane.b32.xlu0 %v951, 127
  %v983 = vpop.permute.xlu0 %982
  %v984 = vsel %vm75, %v953, %v969
  %v985 = vsel %vm75, %v955, %v971
  %v986 = vsel %vm75, %v957, %v973
  %v987 = vsel %vm75, %v959, %v975
  %v988 = vsel %vm75, %v961, %v977
  %v989 = vsel %vm75, %v963, %v979
  %v990 = vsel %vm75, %v965, %v981
  %v991 = vsel %vm75, %v967, %v983
  %v992 = vsel %vm75, %v969, %v953
  %v993 = vsel %vm75, %v971, %v955
  %v994 = vsel %vm75, %v973, %v957
  %v995 = vsel %vm75, %v975, %v959
  %v996 = vsel %vm75, %v977, %v961
  %v997 = vsel %vm75, %v979, %v963
  %v998 = vsel %vm75, %v981, %v965
  %v999 = vsel %vm75, %v983, %v967
  %v1000 = vmax.f32 %v936, %v984
  %v1001 = vmax.f32 %v937, %v992
  %v1002 = vmax.f32 %v938, %v985
  %v1003 = vmax.f32 %v939, %v993
  %v1004 = vmax.f32 %v940, %v986
  %v1005 = vmax.f32 %v941, %v994
  %v1006 = vmax.f32 %v942, %v987
  %v1007 = vmax.f32 %v943, %v995
  %v1008 = vmax.f32 %v944, %v988
  %v1009 = vmax.f32 %v945, %v996
  %v1010 = vmax.f32 %v946, %v989
  %v1011 = vmax.f32 %v947, %v997
  %v1012 = vmax.f32 %v948, %v990
  %v1013 = vmax.f32 %v949, %v998
  %v1014 = vmax.f32 %v950, %v991
  %v1015 = vmax.f32 %v951, %v999
  %v1016 = vld [vmem:[%s7] sm:$0xff]
  %v1017 = vld [vmem:[%s7 + $0x8] sm:$0xff]
  %v1018 = vld [vmem:[%s7 + $0x10] sm:$0xff]
  %v1019 = vld [vmem:[%s7 + $0x18] sm:$0xff]
  %v1020 = vld [vmem:[%s7 + $0x20] sm:$0xff]
  %v1021 = vld [vmem:[%s7 + $0x28] sm:$0xff]
  %v1022 = vld [vmem:[%s7 + $0x30] sm:$0xff]
  %v1023 = vld [vmem:[%s7 + $0x38] sm:$0xff]
  %v1024 = vld [vmem:[%s7 + $0x40] sm:$0xff]
  %v1025 = vld [vmem:[%s7 + $0x48] sm:$0xff]
  %v1026 = vld [vmem:[%s7 + $0x50] sm:$0xff]
  %v1027 = vld [vmem:[%s7 + $0x58] sm:$0xff]
  %v1028 = vld [vmem:[%s7 + $0x60] sm:$0xff]
  %v1029 = vld [vmem:[%s7 + $0x68] sm:$0xff]
  %v1030 = vld [vmem:[%s7 + $0x70] sm:$0xff]
  %v1031 = vld [vmem:[%s7 + $0x78] sm:$0xff]
  %v1032 = vld [vmem:[%s7 + $0x80] sm:$0xff]
  %v1033 = vld [vmem:[%s7 + $0x88] sm:$0xff]
  %v1034 = vld [vmem:[%s7 + $0x90] sm:$0xff]
  %v1035 = vld [vmem:[%s7 + $0x98] sm:$0xff]
  %v1036 = vld [vmem:[%s7 + $0xa0] sm:$0xff]
  %v1037 = vld [vmem:[%s7 + $0xa8] sm:$0xff]
  %v1038 = vld [vmem:[%s7 + $0xb0] sm:$0xff]
  %v1039 = vld [vmem:[%s7 + $0xb8] sm:$0xff]
  %v1040 = vld [vmem:[%s7 + $0xc0] sm:$0xff]
  %v1041 = vld [vmem:[%s7 + $0xc8] sm:$0xff]
  %v1042 = vld [vmem:[%s7 + $0xd0] sm:$0xff]
  %v1043 = vld [vmem:[%s7 + $0xd8] sm:$0xff]
  %v1044 = vld [vmem:[%s7 + $0xe0] sm:$0xff]
  %v1045 = vld [vmem:[%s7 + $0xe8] sm:$0xff]
  %v1046 = vld [vmem:[%s7 + $0xf0] sm:$0xff]
  %v1047 = vld [vmem:[%s7 + $0xf8] sm:$0xff]
  %1048 = vmatprep.subr.mxu0 0.0
  %1049 = vmatpush1.msra.mxu0 %v1031
  %1050 = vmatprep.subr.mxu0 0.0
  %1051 = vmatpush1.msra.mxu0 %v1030
  %1052 = vmatprep.subr.mxu0 0.0
  %1053 = vmatpush1.msra.mxu0 %v1029
  %1054 = vmatprep.subr.mxu0 0.0
  %1055 = vmatpush1.msra.mxu0 %v1028
  %1056 = vmatprep.subr.mxu0 0.0
  %1057 = vmatpush1.msra.mxu0 %v1027
  %1058 = vmatprep.subr.mxu0 0.0
  %1059 = vmatpush1.msra.mxu0 %v1026
  %1060 = vmatprep.subr.mxu0 0.0
  %1061 = vmatpush1.msra.mxu0 %v1025
  %1062 = vmatprep.subr.mxu0 0.0
  %1063 = vmatpush1.msra.mxu0 %v1024
  %1064 = vmatprep.subr.mxu0 0.0
  %1065 = vmatpush1.msra.mxu0 %v1023
  %1066 = vmatprep.subr.mxu0 0.0
  %1067 = vmatpush1.msra.mxu0 %v1022
  %1068 = vmatprep.subr.mxu0 0.0
  %1069 = vmatpush1.msra.mxu0 %v1021
  %1070 = vmatprep.subr.mxu0 0.0
  %1071 = vmatpush1.msra.mxu0 %v1020
  %1072 = vmatprep.subr.mxu0 0.0
  %1073 = vmatpush1.msra.mxu0 %v1019
  %1074 = vmatprep.subr.mxu0 0.0
  %1075 = vmatpush1.msra.mxu0 %v1018
  %1076 = vmatprep.subr.mxu0 0.0
  %1077 = vmatpush1.msra.mxu0 %v1017
  %1078 = vmatprep.subr.mxu0 0.0
  %1079 = vmatpush1.msra.mxu0 %v1016
  %1080 = vmatprep.subr.mxu0 0.0
  %1081 = vmatpush2.msra.mxu0 %v1047
  %1082 = vmatprep.subr.mxu0 0.0
  %1083 = vmatpush2.msra.mxu0 %v1046
  %1084 = vmatprep.subr.mxu0 0.0
  %1085 = vmatpush2.msra.mxu0 %v1045
  %1086 = vmatprep.subr.mxu0 0.0
  %1087 = vmatpush2.msra.mxu0 %v1044
  %1088 = vmatprep.subr.mxu0 0.0
  %1089 = vmatpush2.msra.mxu0 %v1043
  %1090 = vmatprep.subr.mxu0 0.0
  %1091 = vmatpush2.msra.mxu0 %v1042
  %1092 = vmatprep.subr.mxu0 0.0
  %1093 = vmatpush2.msra.mxu0 %v1041
  %1094 = vmatprep.subr.mxu0 0.0
  %1095 = vmatpush2.msra.mxu0 %v1040
  %1096 = vmatprep.subr.mxu0 0.0
  %1097 = vmatpush2.msra.mxu0 %v1039
  %1098 = vmatprep.subr.mxu0 0.0
  %1099 = vmatpush2.msra.mxu0 %v1038
  %1100 = vmatprep.subr.mxu0 0.0
  %1101 = vmatpush2.msra.mxu0 %v1037
  %1102 = vmatprep.subr.mxu0 0.0
  %1103 = vmatpush2.msra.mxu0 %v1036
  %1104 = vmatprep.subr.mxu0 0.0
  %1105 = vmatpush2.msra.mxu0 %v1035
  %1106 = vmatprep.subr.mxu0 0.0
  %1107 = vmatpush2.msra.mxu0 %v1034
  %1108 = vmatprep.subr.mxu0 0.0
  %1109 = vmatpush2.msra.mxu0 %v1033
  %1110 = vmatprep.subr.mxu0 0.0
  %1111 = vmatpush2.msra.mxu0 %v1032
  %1112 = vmatprep.mubr.f32.mxu0 %v1001
  %1113 = vmatmul.mubr.f32.gmra.mxu0 %v1000
  %v1114 = vpop.f32.mrf.mxu0
  %v1115 = vadd.f32 0.0, %v1114
  %v1116 = vpop.f32.mrf.mxu0
  %1117 = vmatprep.mubr.f32.mxu0 %v1003
  %1118 = vmatmul.mubr.f32.gmra.mxu0 %v1002
  %v1119 = vpop.f32.mrf.mxu0
  %v1120 = vadd.f32 0.0, %v1119
  %v1121 = vpop.f32.mrf.mxu0
  %1122 = vmatprep.mubr.f32.mxu0 %v1005
  %1123 = vmatmul.mubr.f32.gmra.mxu0 %v1004
  %v1124 = vpop.f32.mrf.mxu0
  %v1125 = vadd.f32 0.0, %v1124
  %v1126 = vpop.f32.mrf.mxu0
  %1127 = vmatprep.mubr.f32.mxu0 %v1007
  %1128 = vmatmul.mubr.f32.gmra.mxu0 %v1006
  %v1129 = vpop.f32.mrf.mxu0
  %v1130 = vadd.f32 0.0, %v1129
  %v1131 = vpop.f32.mrf.mxu0
  %1132 = vmatprep.mubr.f32.mxu0 %v1009
  %1133 = vmatmul.mubr.f32.gmra.mxu0 %v1008
  %v1134 = vpop.f32.mrf.mxu0
  %v1135 = vadd.f32 0.0, %v1134
  %v1136 = vpop.f32.mrf.mxu0
  %1137 = vmatprep.mubr.f32.mxu0 %v1011
  %1138 = vmatmul.mubr.f32.gmra.mxu0 %v1010
  %v1139 = vpop.f32.mrf.mxu0
  %v1140 = vadd.f32 0.0, %v1139
  %v1141 = vpop.f32.mrf.mxu0
  %1142 = vmatprep.mubr.f32.mxu0 %v1013
  %1143 = vmatmul.mubr.f32.gmra.mxu0 %v1012
  %v1144 = vpop.f32.mrf.mxu0
  %v1145 = vadd.f32 0.0, %v1144
  %v1146 = vpop.f32.mrf.mxu0
  %1147 = vmatprep.mubr.f32.mxu0 %v1015
  %1148 = vmatmul.mubr.f32.gmra.mxu0 %v1014
  %v1149 = vpop.f32.mrf.mxu0
  %v1150 = vadd.f32 0.0, %v1149
  %v1151 = vpop.f32.mrf.mxu0
  %1152 = vdwg.mxu0
  %v1153 = vld [vmem:[%s5] sm:$0x3f]
  %v1154 = vld [vmem:[%s6] sm:$0x3f]
  %1156 = vset.pattern.permute.xlu0 0
  %1157 = vperm.xlu0 %1156, %v1154
  %v1158 = vpop.permute.xlu0 %1157
  %v1161 = vsel %vm298, %v1153, 0
  %1163 = vmatprep.subr.mxu0 0.0
  %1164 = vmatpush1.msra.mxu0 0.0
  %1165 = vmatprep.subr.mxu0 0.0
  %1166 = vmatpush1.msra.mxu0 0.0
  %1167 = vmatprep.subr.mxu0 0.0
  %1168 = vmatpush1.msra.mxu0 0.0
  %1169 = vmatprep.subr.mxu0 0.0
  %1170 = vmatpush1.msra.mxu0 0.0
  %1171 = vmatprep.subr.mxu0 0.0
  %1172 = vmatpush1.msra.mxu0 0.0
  %1173 = vmatprep.subr.mxu0 0.0
  %1174 = vmatpush1.msra.mxu0 0.0
  %1175 = vmatprep.subr.mxu0 0.0
  %1176 = vmatpush1.msra.mxu0 0.0
  %1177 = vmatprep.subr.mxu0 0.0
  %1178 = vmatpush1.msra.mxu0 0.0
  %1179 = vmatprep.subr.mxu0 0.0
  %1180 = vmatpush1.msra.mxu0 %v1150
  %1181 = vmatprep.subr.mxu0 0.0
  %1182 = vmatpush1.msra.mxu0 %v1145
  %1183 = vmatprep.subr.mxu0 0.0
  %1184 = vmatpush1.msra.mxu0 %v1140
  %1185 = vmatprep.subr.mxu0 0.0
  %1186 = vmatpush1.msra.mxu0 %v1135
  %1187 = vmatprep.subr.mxu0 0.0
  %1188 = vmatpush1.msra.mxu0 %v1130
  %1189 = vmatprep.subr.mxu0 0.0
  %1190 = vmatpush1.msra.mxu0 %v1125
  %1191 = vmatprep.subr.mxu0 0.0
  %1192 = vmatpush1.msra.mxu0 %v1120
  %1193 = vmatprep.subr.mxu0 0.0
  %1194 = vmatpush1.msra.mxu0 %v1115
  %1195 = vmatprep.subr.mxu0 0.0
  %1196 = vmatpush2.msra.mxu0 0.0
  %1197 = vmatprep.subr.mxu0 0.0
  %1198 = vmatpush2.msra.mxu0 0.0
  %1199 = vmatprep.subr.mxu0 0.0
  %1200 = vmatpush2.msra.mxu0 0.0
  %1201 = vmatprep.subr.mxu0 0.0
  %1202 = vmatpush2.msra.mxu0 0.0
  %1203 = vmatprep.subr.mxu0 0.0
  %1204 = vmatpush2.msra.mxu0 0.0
  %1205 = vmatprep.subr.mxu0 0.0
  %1206 = vmatpush2.msra.mxu0 0.0
  %1207 = vmatprep.subr.mxu0 0.0
  %1208 = vmatpush2.msra.mxu0 0.0
  %1209 = vmatprep.subr.mxu0 0.0
  %1210 = vmatpush2.msra.mxu0 0.0
  %1211 = vmatprep.subr.mxu0 0.0
  %1212 = vmatpush2.msra.mxu0 0.0
  %1213 = vmatprep.subr.mxu0 0.0
  %1214 = vmatpush2.msra.mxu0 0.0
  %1215 = vmatprep.subr.mxu0 0.0
  %1216 = vmatpush2.msra.mxu0 0.0
  %1217 = vmatprep.subr.mxu0 0.0
  %1218 = vmatpush2.msra.mxu0 0.0
  %1219 = vmatprep.subr.mxu0 0.0
  %1220 = vmatpush2.msra.mxu0 0.0
  %1221 = vmatprep.subr.mxu0 0.0
  %1222 = vmatpush2.msra.mxu0 0.0
  %1223 = vmatprep.subr.mxu0 0.0
  %1224 = vmatpush2.msra.mxu0 0.0
  %1225 = vmatprep.subr.mxu0 0.0
  %1226 = vmatpush2.msra.mxu0 0.0
  %1227 = vmatprep.mubr.f32.mxu0 0.0
  %1228 = vmatmul.mubr.f32.gmra.mxu0 %v1161
  %v1229 = vpop.f32.mrf.mxu0
  %v1230 = vadd.f32 %v1158, %v1229
  %v1231 = vpop.f32.mrf.mxu0
  %1232 = vdwg.mxu0
  %vm1233 = vcmask 29696
  %1234 = vst.msk [vmem:[%s8] sm:$0x3f] %vm1233, %v1230
  // Predicated region
  $region34: #{har_forward.1} parent=0 // pred_check
    _
  $region35: #{har_forward.1} parent=0 // pred_check_branch
    %1236 = sbr.rel (0) target = $region37
  $region36: #{har_forward.1} parent=0 // pred_region
    _
  $region37: #{har_forward.1} parent=0 // pred_fallthru
    _
  // Predicated region
  $region38: #{har_forward.1} parent=0 // pred_check
    _
  $region39: #{har_forward.1} parent=0 // pred_check_branch
    %1238 = sbr.rel (0) target = $region41
  $region40: #{har_forward.1} parent=0 // pred_region
    _
  $region41: #{har_forward.1} parent=0 // pred_fallthru
    _

</llo_original>
